<compile_context>
chip_gen: v7x
topology: tpu7x:2x2x1
jax: 0.10.0
libtpu: 0.0.40
codegen_flags: <defaults>
</compile_context>

<pallas_src>
import jax
import jax.numpy as jnp
from jax import lax
from jax.experimental import pallas as pl
from jax.experimental.pallas import tpu as pltpu

DENSITY_WEIGHT = 0.1
_NEG_BIG = -1e30                       # class/batch padding value (exp underflows to 0)
_VMEM_LIMIT = 48 * 1024 * 1024         # safe on v5e/v6e (128 MiB) and v7x (64 MiB)


def _round_up(x, m):
    return ((x + m - 1) // m) * m


# --------------------------------------------------------------------------
# Cross-entropy (mean NLL) kernel: online logsumexp over class tiles.
# --------------------------------------------------------------------------
def _ce_nll_kernel(logits_ref, labels_ref, nll_ref, m_sc, l_sc, sel_sc):
    j = pl.program_id(1)
    ncls = pl.num_programs(1)

    @pl.when(j == 0)
    def _():
        m_sc[...] = jnp.full(m_sc.shape, -jnp.inf, jnp.float32)
        l_sc[...] = jnp.zeros(l_sc.shape, jnp.float32)
        sel_sc[...] = jnp.zeros(sel_sc.shape, jnp.float32)

    s = logits_ref[...].astype(jnp.float32)                       # (tb, tc)
    tb, tc = s.shape
    labels = labels_ref[...]                                      # (tb, 1) int32

    # Global class index of each column in this class tile.
    cls = j * tc + lax.broadcasted_iota(jnp.int32, (tb, tc), 1)

    # Online logsumexp (flash-attention style running max / running sum).
    m_prev = m_sc[...]
    m_new = jnp.maximum(m_prev, jnp.max(s, axis=-1, keepdims=True))
    alpha = jnp.exp(m_prev - m_new)
    l_sc[...] = alpha * l_sc[...] + jnp.sum(jnp.exp(s - m_new), axis=-1,
                                            keepdims=True)
    m_sc[...] = m_new

    # Selected (label) logit via select -- no one-hot f32 materialization.
    sel_sc[...] += jnp.sum(jnp.where(cls == labels, s, 0.0), axis=-1,
                           keepdims=True)

    @pl.when(j == ncls - 1)
    def _():
        lse = m_sc[...] + jnp.log(l_sc[...])                      # (tb, 1)
        nll = lse - sel_sc[...]
        # Padded batch rows carry label == -1 -> contribute 0 to the sum.
        nll_ref[...] = jnp.where(labels >= 0, nll, 0.0)


def _ce_mean_nll(logits, labels, *, tile_b=256, tile_c=512):
    B, C = logits.shape

    tb = min(tile_b, _round_up(B, 8))
    b_pad = _round_up(B, tb)
    tc = tile_c if C > tile_c else _round_up(C, 128)
    c_pad = _round_up(C, tc)

    logits_p = jnp.pad(logits.astype(jnp.float32),
                       ((0, b_pad - B), (0, c_pad - C)),
                       constant_values=_NEG_BIG)
    labels_p = jnp.pad(labels.astype(jnp.int32), (0, b_pad - B),
                       constant_values=-1).reshape(b_pad, 1)

    nb = b_pad // tb
    nc = c_pad // tc

    grid_spec = pltpu.PrefetchScalarGridSpec(
        num_scalar_prefetch=0,
        grid=(nb, nc),
        in_specs=[
            pl.BlockSpec((tb, tc), lambda i, j: (i, j)),
            pl.BlockSpec((tb, 1), lambda i, j: (i, 0)),
        ],
        out_specs=pl.BlockSpec((tb, 1), lambda i, j: (i, 0)),
        scratch_shapes=[pltpu.VMEM((tb, 1), jnp.float32)] * 3,
    )

    cost = pl.CostEstimate(
        flops=int(5 * b_pad * c_pad),
        transcendentals=int(b_pad * c_pad),
        bytes_accessed=int(4 * (b_pad * c_pad + 2 * b_pad)),
    )

    nll = pl.pallas_call(
        _ce_nll_kernel,
        out_shape=jax.ShapeDtypeStruct((b_pad, 1), jnp.float32),
        grid_spec=grid_spec,
        compiler_params=pltpu.CompilerParams(
            dimension_semantics=("parallel", "arbitrary"),
            vmem_limit_bytes=_VMEM_LIMIT),
        cost_estimate=cost,
    )(logits_p, labels_p)

    return jnp.sum(nll) / jnp.float32(B)


# --------------------------------------------------------------------------
# Density regularizer kernel: per-tile lane-dense partial sums of d*d.
# --------------------------------------------------------------------------
def _density_sq_kernel(d_ref, partial_ref):
    d = d_ref[...].astype(jnp.float32)                            # (tr, w)
    # Reduce only along the sublane/free axis (mostly vreg+vreg VPU adds);
    # the single cross-lane reduce happens on the tiny partial slab outside.
    partial_ref[...] = jnp.sum(d * d, axis=0, keepdims=True)      # (1, w)


def _density_mean_sq(density, *, width=512, tile_rows=256):
    dflat = density.reshape(-1).astype(jnp.float32)
    n = dflat.shape[0]

    w = width if n >= width else 128
    rows = pl.cdiv(n, w)
    tr = min(tile_rows, _round_up(rows, 8))
    rows_pad = _round_up(rows, tr)
    total = rows_pad * w

    d2d = jnp.pad(dflat, (0, total - n)).reshape(rows_pad, w)     # zero pad: no effect on sum
    nt = rows_pad // tr

    cost = pl.CostEstimate(
        flops=int(2 * total),
        transcendentals=0,
        bytes_accessed=int(4 * (total + nt * w)),
    )

    partials = pl.pallas_call(
        _density_sq_kernel,
        out_shape=jax.ShapeDtypeStruct((nt, w), jnp.float32),
        grid_spec=pltpu.PrefetchScalarGridSpec(
            num_scalar_prefetch=0,
            grid=(nt,),
            in_specs=[pl.BlockSpec((tr, w), lambda i: (i, 0))],
            out_specs=pl.BlockSpec((1, w), lambda i: (i, 0)),
        ),
        compiler_params=pltpu.CompilerParams(
            dimension_semantics=("parallel",),
            vmem_limit_bytes=_VMEM_LIMIT),
        cost_estimate=cost,
    )(d2d)

    return jnp.sum(partials) / jnp.float32(n)


# --------------------------------------------------------------------------
# Public entry point (matches DensityAwareLoss.forward).
# --------------------------------------------------------------------------
def density_aware_loss(logits, labels, density, density_weight=DENSITY_WEIGHT):
    base_loss = _ce_mean_nll(logits, labels)
    density_loss = _density_mean_sq(density)
    return base_loss + jnp.float32(density_weight) * density_loss


def _reference_loss(logits, labels, density):
    logp = jax.nn.log_softmax(logits.astype(jnp.float32), axis=-1)
    nll = -jnp.take_along_axis(logp, labels[:, None].astype(jnp.int32), axis=-1)[:, 0]
    base = jnp.mean(nll)
    dens = jnp.mean(jnp.square(density.astype(jnp.float32)))
    return base + DENSITY_WEIGHT * dens


if __name__ == "__main__":
    key = jax.random.PRNGKey(0)
    k1, k2, k3 = jax.random.split(key, 3)

    B, C = 8, 128                                   # batch, num classes
    logits = jax.random.normal(k1, (B, C), dtype=jnp.float32)
    labels = jax.random.randint(k2, (B,), 0, C, dtype=jnp.int32)
    density = jax.random.normal(k3, (2, 4, 16, 16), dtype=jnp.float32)

    loss = density_aware_loss(logits, labels, density)
    loss = jax.block_until_ready(loss)

    ref = _reference_loss(logits, labels, density)
    assert jnp.allclose(loss, ref, atol=1e-5, rtol=1e-5), (loss, ref)

    print("KERNEL_OK")
</pallas_src>

<mosaic_0001>
module attributes {stable_mosaic.version = 11 : i64} {
  func.func @_ce_nll_kernel(%arg0: i32, %arg1: i32, %arg2: memref<8x128xf32, #tpu.memory_space<vmem>>, %arg3: memref<8x1xi32, #tpu.memory_space<vmem>>, %arg4: memref<8x1xf32, #tpu.memory_space<vmem>>, %arg5: memref<8x1xf32, #tpu.memory_space<vmem>>, %arg6: memref<8x1xf32, #tpu.memory_space<vmem>>, %arg7: memref<8x1xf32, #tpu.memory_space<vmem>>) attributes {dimension_semantics = [#tpu.dimension_semantics<parallel>, #tpu.dimension_semantics<arbitrary>], iteration_bounds = array<i64: 1, 1>, scalar_prefetch = 0 : i64, scratch_operands = 3 : i64, tpu.core_type = #tpu.core_type<tc>, window_params = [{transform_indices = @transform_0, window_bounds = array<i64: 8, 128>}, {transform_indices = @transform_1, window_bounds = array<i64: 8, 1>}, {transform_indices = @transform_2, window_bounds = array<i64: 8, 1>}]} {
    %c0_i32 = arith.constant 0 : i32
    %0 = arith.cmpi eq, %arg1, %c0_i32 : i32
    %1 = arith.extui %0 : i1 to i32
    %c0_i32_0 = arith.constant 0 : i32
    %2 = arith.cmpi ne, %1, %c0_i32_0 : i32
    scf.if %2 {
      %cst_21 = arith.constant 0xFF800000 : f32
      %37 = vector.broadcast %cst_21 : f32 to vector<8x1xf32>
      %c0_22 = arith.constant 0 : index
      %c0_23 = arith.constant 0 : index
      %38 = vector.load %arg5[%c0_22, %c0_23] : memref<8x1xf32, #tpu.memory_space<vmem>>, vector<8x1xf32>
      tpu.vector_store %arg5[%c0_22, %c0_23], %37 {strides = array<i32>} : memref<8x1xf32, #tpu.memory_space<vmem>>, vector<8x1xf32>,
      %cst_24 = arith.constant 0.000000e+00 : f32
      %39 = vector.broadcast %cst_24 : f32 to vector<8x1xf32>
      %c0_25 = arith.constant 0 : index
      %c0_26 = arith.constant 0 : index
      %40 = vector.load %arg6[%c0_25, %c0_26] : memref<8x1xf32, #tpu.memory_space<vmem>>, vector<8x1xf32>
      tpu.vector_store %arg6[%c0_25, %c0_26], %39 {strides = array<i32>} : memref<8x1xf32, #tpu.memory_space<vmem>>, vector<8x1xf32>,
      %cst_27 = arith.constant 0.000000e+00 : f32
      %41 = vector.broadcast %cst_27 : f32 to vector<8x1xf32>
      %c0_28 = arith.constant 0 : index
      %c0_29 = arith.constant 0 : index
      %42 = vector.load %arg7[%c0_28, %c0_29] : memref<8x1xf32, #tpu.memory_space<vmem>>, vector<8x1xf32>
      tpu.vector_store %arg7[%c0_28, %c0_29], %41 {strides = array<i32>} : memref<8x1xf32, #tpu.memory_space<vmem>>, vector<8x1xf32>,
    } else {
    }
    %c0 = arith.constant 0 : index
    %c0_1 = arith.constant 0 : index
    %3 = vector.load %arg2[%c0, %c0_1] : memref<8x128xf32, #tpu.memory_space<vmem>>, vector<8x128xf32>
    %c0_2 = arith.constant 0 : index
    %c0_3 = arith.constant 0 : index
    %4 = vector.load %arg3[%c0_2, %c0_3] : memref<8x1xi32, #tpu.memory_space<vmem>>, vector<8x1xi32>
    %c128_i32 = arith.constant 128 : i32
    %5 = arith.muli %arg1, %c128_i32 : i32
    %6 = tpu.iota {dimensions = array<i32: 1>} : vector<8x128xi32>
    %7 = vector.broadcast %5 : i32 to vector<8x128xi32>
    %8 = arith.addi %7, %6 : vector<8x128xi32>
    %c0_4 = arith.constant 0 : index
    %c0_5 = arith.constant 0 : index
    %9 = vector.load %arg5[%c0_4, %c0_5] : memref<8x1xf32, #tpu.memory_space<vmem>>, vector<8x1xf32>
    %cst = arith.constant dense<0xFF800000> : vector<8xf32>
    %10 = vector.multi_reduction <maximumf>, %3, %cst [1] : vector<8x128xf32> to vector<8xf32>
    %11 = vector.shape_cast %10 : vector<8xf32> to vector<8x1xf32>
    %12 = arith.maximumf %9, %11 : vector<8x1xf32>
    %13 = arith.subf %9, %12 : vector<8x1xf32>
    %14 = math.exp %13 : vector<8x1xf32>
    %c0_6 = arith.constant 0 : index
    %c0_7 = arith.constant 0 : index
    %15 = vector.load %arg6[%c0_6, %c0_7] : memref<8x1xf32, #tpu.memory_space<vmem>>, vector<8x1xf32>
    %16 = arith.mulf %14, %15 : vector<8x1xf32>
    %17 = vector.broadcast %12 : vector<8x1xf32> to vector<8x128xf32>
    %18 = arith.subf %3, %17 : vector<8x128xf32>
    %19 = math.exp %18 : vector<8x128xf32>
    %cst_8 = arith.constant dense<0.000000e+00> : vector<8xf32>
    %20 = vector.multi_reduction <add>, %19, %cst_8 [1] : vector<8x128xf32> to vector<8xf32>
    %21 = vector.shape_cast %20 : vector<8xf32> to vector<8x1xf32>
    %22 = arith.addf %16, %21 : vector<8x1xf32>
    %c0_9 = arith.constant 0 : index
    %c0_10 = arith.constant 0 : index
    %23 = vector.load %arg6[%c0_9, %c0_10] : memref<8x1xf32, #tpu.memory_space<vmem>>, vector<8x1xf32>
    tpu.vector_store %arg6[%c0_9, %c0_10], %22 {strides = array<i32>} : memref<8x1xf32, #tpu.memory_space<vmem>>, vector<8x1xf32>,
    %c0_11 = arith.constant 0 : index
    %c0_12 = arith.constant 0 : index
    %24 = vector.load %arg5[%c0_11, %c0_12] : memref<8x1xf32, #tpu.memory_space<vmem>>, vector<8x1xf32>
    tpu.vector_store %arg5[%c0_11, %c0_12], %12 {strides = array<i32>} : memref<8x1xf32, #tpu.memory_space<vmem>>, vector<8x1xf32>,
    %c0_13 = arith.constant 0 : index
    %c0_14 = arith.constant 0 : index
    %25 = vector.load %arg7[%c0_13, %c0_14] : memref<8x1xf32, #tpu.memory_space<vmem>>, vector<8x1xf32>
    %26 = vector.broadcast %4 : vector<8x1xi32> to vector<8x128xi32>
    %27 = arith.cmpi eq, %8, %26 : vector<8x128xi32>
    %cst_15 = arith.constant 0.000000e+00 : f32
    %28 = vector.broadcast %cst_15 : f32 to vector<8x128xf32>
    %29 = arith.select %27, %3, %28 : vector<8x128xi1>, vector<8x128xf32>
    %cst_16 = arith.constant dense<0.000000e+00> : vector<8xf32>
    %30 = vector.multi_reduction <add>, %29, %cst_16 [1] : vector<8x128xf32> to vector<8xf32>
    %31 = vector.shape_cast %30 : vector<8xf32> to vector<8x1xf32>
    %32 = arith.addf %25, %31 : vector<8x1xf32>
    %c0_17 = arith.constant 0 : index
    %c0_18 = arith.constant 0 : index
    %33 = vector.load %arg7[%c0_17, %c0_18] : memref<8x1xf32, #tpu.memory_space<vmem>>, vector<8x1xf32>
    tpu.vector_store %arg7[%c0_17, %c0_18], %32 {strides = array<i32>} : memref<8x1xf32, #tpu.memory_space<vmem>>, vector<8x1xf32>,
    %c0_i32_19 = arith.constant 0 : i32
    %34 = arith.cmpi eq, %arg1, %c0_i32_19 : i32
    %35 = arith.extui %34 : i1 to i32
    %c0_i32_20 = arith.constant 0 : i32
    %36 = arith.cmpi ne, %35, %c0_i32_20 : i32
    scf.if %36 {
      %c0_21 = arith.constant 0 : index
      %c0_22 = arith.constant 0 : index
      %37 = vector.load %arg5[%c0_21, %c0_22] : memref<8x1xf32, #tpu.memory_space<vmem>>, vector<8x1xf32>
      %c0_23 = arith.constant 0 : index
      %c0_24 = arith.constant 0 : index
      %38 = vector.load %arg6[%c0_23, %c0_24] : memref<8x1xf32, #tpu.memory_space<vmem>>, vector<8x1xf32>
      %39 = math.log %38 : vector<8x1xf32>
      %40 = arith.addf %37, %39 : vector<8x1xf32>
      %c0_25 = arith.constant 0 : index
      %c0_26 = arith.constant 0 : index
      %41 = vector.load %arg7[%c0_25, %c0_26] : memref<8x1xf32, #tpu.memory_space<vmem>>, vector<8x1xf32>
      %42 = arith.subf %40, %41 : vector<8x1xf32>
      %c0_i32_27 = arith.constant 0 : i32
      %43 = vector.broadcast %c0_i32_27 : i32 to vector<8x1xi32>
      %44 = arith.cmpi sge, %4, %43 : vector<8x1xi32>
      %cst_28 = arith.constant 0.000000e+00 : f32
      %45 = vector.broadcast %cst_28 : f32 to vector<8x1xf32>
      %46 = arith.select %44, %42, %45 : vector<8x1xi1>, vector<8x1xf32>
      %c0_29 = arith.constant 0 : index
      %c0_30 = arith.constant 0 : index
      %47 = vector.load %arg4[%c0_29, %c0_30] : memref<8x1xf32, #tpu.memory_space<vmem>>, vector<8x1xf32>
      tpu.vector_store %arg4[%c0_29, %c0_30], %46 {strides = array<i32>} : memref<8x1xf32, #tpu.memory_space<vmem>>, vector<8x1xf32>,
    } else {
    }
    return
  }
  func.func @transform_0(%arg0: i32, %arg1: i32) -> (i32, i32) {
    %c0_i32 = arith.constant 0 : i32
    return %arg0, %arg1 : i32, i32
  }
  func.func @transform_1(%arg0: i32, %arg1: i32) -> (i32, i32) {
    %c0_i32 = arith.constant 0 : i32
    %c0_i32_0 = arith.constant 0 : i32
    return %arg0, %c0_i32 : i32, i32
  }
  func.func @transform_2(%arg0: i32, %arg1: i32) -> (i32, i32) {
    %c0_i32 = arith.constant 0 : i32
    %c0_i32_0 = arith.constant 0 : i32
    return %arg0, %c0_i32 : i32, i32
  }
}

</mosaic_0001>

<llo_original>
// kernel: tpu_custom_call.1
$region0: #{tpu_custom_call.1}
  #allocation0 [shape = 'u32[]', space=smem, size = 0x4, offset = 0x4, fixed_abs, tag = 'smem constant byte address 0x4 - core index']
  #allocation1 [shape = 'u32[144,128]{1,0:T(1,128)}', space=vmem, size = 0x12000, scoped, tag = 'internal scratch']
  #allocation2 [shape = 'f32[8,1]{1,0:T(8,128)}', space=vmem, size = 0x1000, scoped, tag = 'scratch operand']
  #allocation3 [shape = 'f32[8,1]{1,0:T(8,128)}', space=vmem, size = 0x1000, scoped, tag = 'scratch operand']
  #allocation4 [shape = 'f32[8,1]{1,0:T(8,128)}', space=vmem, size = 0x1000, scoped, tag = 'scratch operand']
  %s0 = inlined_call_operand.vmem [shape: f32[8,128], index: 0, kind: input, shape index: {}]
  %s1 = inlined_call_operand.vmem [shape: s32[8,1], index: 1, kind: input, shape index: {}]
  %s2 = inlined_call_operand.vmem [shape: f32[8,1], index: 2, kind: output, shape index: {}]
  %s3 = sld [smem:[#allocation0]]
  $region26: #{tpu_custom_call.1} parent=0
    _
  %s5 = ssub.s32 1, %s3
  %s6 = scalar_select 0, %s5, %s3
  // Predicated region
  $region2: #{tpu_custom_call.1} parent=0 // pred_check
    _
  $region3: #{tpu_custom_call.1} parent=0 // pred_check_branch
    %8 = sbr.rel (0) target = $region5
  $region4: #{tpu_custom_call.1} parent=0 // pred_region
    _
  $region5: #{tpu_custom_call.1} parent=0 // pred_fallthru
    _
  // Predicated region
  $region6: #{tpu_custom_call.1} parent=0 // pred_check
    _
  $region7: #{tpu_custom_call.1} parent=0 // pred_check_branch
    %10 = sbr.rel (0) target = $region9
  $region8: #{tpu_custom_call.1} parent=0 // pred_region
    _
  $region9: #{tpu_custom_call.1} parent=0 // pred_fallthru
    _
  %p11 = scmp.eq.s32.totalorder 0, 0
  // Predicated region
  $region10: #{tpu_custom_call.1} parent=0 // pred_check
    %p12 = pneg %p11
  $region11: #{tpu_custom_call.1} parent=0 // pred_check_branch
    %14 = sbr.rel (%p12) target = $region13
  $region12: #{tpu_custom_call.1} parent=0 // pred_region
    %vm15 = vcmask 7168
    %16 = vst.msk [vmem:[#allocation2] sm:$0xff] %vm15, -inf
    %17 = vst.msk [vmem:[#allocation3] sm:$0xff] %vm15, 0.0
    %18 = vst.msk [vmem:[#allocation4] sm:$0xff] %vm15, 0.0
  $region13: #{tpu_custom_call.1} parent=0 // pred_fallthru
    _
  %v19 = vld [vmem:[%s0] sm:$0xff]
  %v20 = vld [vmem:[%s1] sm:$0xff]
  %s21 = smul.u32 0, 128
  %v22 = vlaneseq
  %v23 = vand.u32 %v22, 127
  %v24 = vstv %s21
  %v25 = vadd.s32 %v24, %v23
  %v26 = vld [vmem:[#allocation2] sm:$0xff]
  %27 = vmax.xlane.f32.xlu0 %v19
  %v28 = vpop.xlane.xlu0 %27
  %v29 = vmax.f32 %v26, %v28
  %v30 = vsub.f32 %v26, %v29
  %v31 = vmul.f32 %v30, 1.442695
  %v32 = vpow.pop %v31
  %v33 = vld [vmem:[#allocation3] sm:$0xff]
  %v34 = vmul.f32 %v32, %v33
  %36 = vset.pattern.permute.xlu0 0
  %37 = vperm.xlu0 %36, %v29
  %v38 = vpop.permute.xlu0 %37
  %v40 = vsub.f32 %v19, %v38
  %v41 = vmul.f32 %v40, 1.442695
  %v42 = vpow.pop %v41
  %43 = vadd.xlane.f32.xlu0 %v42
  %v44 = vpop.xlane.xlu0 %43
  %v45 = vadd.f32 %v34, %v44
  %vm46 = vcmask 7168
  %47 = vst.msk [vmem:[#allocation3] sm:$0xff] %vm46, %v45
  %48 = vst.msk [vmem:[#allocation2] sm:$0xff] %vm46, %v29
  %v49 = vld [vmem:[#allocation4] sm:$0xff]
  %50 = vset.pattern.permute.xlu0 0
  %51 = vperm.xlu0 %50, %v20
  %v52 = vpop.permute.xlu0 %51
  %vm53 = vcmp.eq.s32.totalorder %v25, %v52
  %v54 = vsel %vm53, %v19, 0.0
  %55 = vadd.xlane.f32.xlu0 %v54
  %v56 = vpop.xlane.xlu0 %55
  %v57 = vadd.f32 %v49, %v56
  %58 = vst.msk [vmem:[#allocation4] sm:$0xff] %vm46, %v57
  // Predicated region
  $region14: #{tpu_custom_call.1} parent=0 // pred_check
    %p59 = pneg %p11
  $region15: #{tpu_custom_call.1} parent=0 // pred_check_branch
    %61 = sbr.rel (%p59) target = $region17
  $region16: #{tpu_custom_call.1} parent=0 // pred_region
    %v62 = vld [vmem:[#allocation2] sm:$0xff]
    %v63 = vld [vmem:[#allocation3] sm:$0xff]
    %v64 = vlog2.pop %v63
    %v65 = vmul.f32 %v64, 0.6931472
    %v66 = vadd.f32 %v62, %v65
    %v67 = vld [vmem:[#allocation4] sm:$0xff]
    %v68 = vsub.f32 %v66, %v67
    %vm69 = vcmp.ge.s32.totalorder %v20, 0
    %v70 = vsel %vm69, %v68, 0.0
    %71 = vst.msk [vmem:[%s2] sm:$0xff] %vm46, %v70
  $region17: #{tpu_custom_call.1} parent=0 // pred_fallthru
    _
  // Predicated region
  $region18: #{tpu_custom_call.1} parent=0 // pred_check
    _
  $region19: #{tpu_custom_call.1} parent=0 // pred_check_branch
    %73 = sbr.rel (0) target = $region21
  $region20: #{tpu_custom_call.1} parent=0 // pred_region
    _
  $region21: #{tpu_custom_call.1} parent=0 // pred_fallthru
    _
  // Predicated region
  $region22: #{tpu_custom_call.1} parent=0 // pred_check
    _
  $region23: #{tpu_custom_call.1} parent=0 // pred_check_branch
    %75 = sbr.rel (0) target = $region25
  $region24: #{tpu_custom_call.1} parent=0 // pred_region
    _
  $region25: #{tpu_custom_call.1} parent=0 // pred_fallthru
    _

</llo_original>
